<compile_context>
chip_gen: v7x
topology: tpu7x:2x2x1
jax: 0.10.0
libtpu: 0.0.40
codegen_flags: <defaults>
</compile_context>

<pallas_src>
import jax
import jax.numpy as jnp
import numpy as np
from jax import lax
from jax.experimental import pallas as pl
from jax.experimental.pallas import tpu as pltpu

CIN = 3      # true input channels (not padded in HBM)
C1 = 6       # conv1 output channels
C1_PAD = 8   # conv1 channels padded to 8 -> lane-dense pooled slab is W*8 lanes
C2 = 16      # conv2 output channels
KH = KW = 3


def _fused_kernel(x_ref, w1_ref, b1_ref, w2_ref, b2_ref, out_ref):
    # x_ref  : (Nb, H+2, (W+2)*CIN) bf16, spatially pre-padded by 1, lane-dense
    # w1_ref : (KH, (W+2)*CIN, W*C1_PAD) bf16 block-Toeplitz row-conv weights
    # b1_ref : (1, W*C1_PAD) f32 bias tiled per output pixel
    # w2_ref : (KH, W*C1_PAD, W*C2) bf16 (conv2 left/right zero pad folded in)
    # b2_ref : (1, W*C2) f32
    # out_ref: (Nb*H, W*C2) f32 lane-dense slab; last row / last C2 lanes of each
    #          row are over-computed and cropped in the wrapper.
    Nb, Hp2, _ = x_ref.shape
    H = Hp2 - 2
    L1 = w1_ref.shape[2]          # W * C1_PAD (128 when W=16)

    def row_conv(slab, w_ref, b_row):
        # sum of 3 kh-tap matmuls; kw taps + output-pixel packing live in the
        # Toeplitz weight, so no im2col patch matrix is ever materialized.
        acc = b_row
        for kh in range(KH):
            p = slab[:, kh:kh + H, :].reshape(Nb * H, slab.shape[2])
            acc = acc + jnp.dot(p, w_ref[kh], preferred_element_type=jnp.float32)
        return acc

    # ---- conv1: (Nb*H, (W+2)*CIN) @ ((W+2)*CIN, W*C1_PAD), f32 accumulation
    y1 = row_conv(x_ref[...], w1_ref, b1_ref[...])                 # (Nb*H, L1) f32

    # ---- 2x2 stride-1 max pool, lane-dense.
    # Along W the neighbour pixel sits C1_PAD lanes to the right (circular roll;
    # the wrapped last block is masked below and doubles as conv2's right pad).
    yw = jnp.maximum(y1, pltpu.roll(y1, shift=L1 - C1_PAD, axis=1))
    yw = yw.reshape(Nb, H, L1)
    yp = jnp.maximum(yw[:, :H - 1, :], yw[:, 1:H, :])               # (Nb, H-1, L1)
    lane = lax.broadcasted_iota(jnp.int32, yp.shape, 2)
    yp = jnp.where(lane < L1 - C1_PAD, yp, 0.0)

    # ---- conv2 input slab: one zero row on top (pad), two at the bottom
    # (pad + over-compute).  The left zero pad is folded into the Toeplitz
    # weight, so no lane shift is needed.  Pool/pad math stays f32 (v5e VPU).
    ztop = jnp.zeros((Nb, 1, L1), jnp.float32)
    zbot = jnp.zeros((Nb, 2, L1), jnp.float32)
    v = jnp.concatenate([ztop, yp, zbot], axis=1).astype(jnp.bfloat16)  # (Nb, H+2, L1)

    # ---- conv2: (Nb*H, W*C1_PAD) @ (W*C1_PAD, W*C2)
    out_ref[...] = row_conv(v, w2_ref, b2_ref[...])                 # (Nb*H, W*C2)


def _pack_toeplitz(w, W_out, n_pos, pos_off, cin_pad, cout_pad):
    """OIHW conv weight -> (KH, n_pos*cin_pad, W_out*cout_pad) block-Toeplitz
    row-convolution matrices (one per kh tap).

    Output pixel w, channel co reads input position p = w + kw + pos_off,
    channel ci; positions outside [0, n_pos) are dropped (implicit zero pad)."""
    Cout, Cin, KHt, KWt = w.shape
    wt = jnp.transpose(w, (2, 3, 1, 0))                              # (KH, KW, Cin, Cout)
    wt = jnp.pad(wt, ((0, 0), (0, 0), (0, cin_pad - Cin), (0, cout_pad - Cout)))
    p = np.arange(n_pos)[:, None, None]
    wcol = np.arange(W_out)[None, :, None]
    kw = np.arange(KWt)[None, None, :]
    sel = jnp.asarray((p == wcol + kw + pos_off).astype(np.float32))  # (n_pos, W_out, KW)
    t = jnp.einsum('pwk,hkic->hpiwc', sel, wt)                        # (KH,p,ci,w,co)
    return t.reshape(KHt, n_pos * cin_pad, W_out * cout_pad).astype(jnp.bfloat16)


def _vmem_capacity():
    try:
        return int(pltpu.get_tpu_info().vmem_capacity_bytes)
    except Exception:
        return 64 * 1024 * 1024        # conservative default (v7x per-core VMEM)


def _pick_batch_block(N, H, W, weight_bytes, vmem_cap):
    # Per-image bytes: double-buffered in/out blocks + live f32 intermediates.
    in_blk = (H + 2) * (W + 2) * CIN * 2                 # bf16 input block
    out_blk = H * W * C2 * 4                             # f32 output block
    inter = (4 * H * W * C1_PAD * 4                      # y1 / yw / yp slabs
             + (H + 2) * W * C1_PAD * 6                  # conv2 input slab (f32+bf16)
             + 2 * H * W * C2 * 4)                       # conv2 accumulators
    per_img = 2 * in_blk + 2 * out_blk + inter
    budget = max((vmem_cap - 2 * weight_bytes) // 3, 4 << 20)
    nb = max(1, min(N, budget // max(per_img, 1)))
    # Keep >= 2 grid steps when N allows so v7x's two TensorCores both get work
    # (<= ~0.35us/step extra on single-core v5e/v6e -- negligible).
    nb = min(nb, max(1, pl.cdiv(N, 2)))
    while N % nb:
        nb -= 1
    return nb, per_img


def fused_forward(x_nchw, w1, b1, w2, b2):
    # x_nchw: (N, 3, H, W) f32; w1: (6,3,3,3); b1: (6,); w2: (16,6,3,3); b2: (16,)
    # TODO(synk): very large spatial sizes (e.g. the 512x512 spec shape) need an
    # H row-band grid axis plus P-pixel strip packing along W (the full-row
    # Toeplitz weights below grow as W^2); only whole-image blocks are done here.
    N, Cin, H, W = x_nchw.shape
    assert Cin == CIN
    Ho, Wo = H - 1, W - 1
    Lin, L1, L2 = (W + 2) * CIN, W * C1_PAD, W * C2

    # NCHW -> lane-dense (N, H+2, (W+2)*3): spatial zero-pad 1 (conv1 padding),
    # keep the true 3 channels (no HBM channel padding), cast to bf16 for DMA/MXU.
    x = jnp.transpose(x_nchw, (0, 2, 3, 1))
    x = jnp.pad(x, ((0, 0), (1, 1), (1, 1), (0, 0))).reshape(N, H + 2, Lin)
    x = x.astype(jnp.bfloat16)

    # conv1 Toeplitz: slab position p = w + kw (position 0 is the left zero pad).
    w1m = _pack_toeplitz(w1, W, W + 2, 0, CIN, C1_PAD)               # (3, Lin, L1)
    b1m = jnp.tile(jnp.pad(b1, (0, C1_PAD - C1)), W).reshape(1, L1).astype(jnp.float32)
    # conv2 Toeplitz: pooled position p = w + kw - 1 (p=-1 / p>=W dropped = zero pad).
    w2m = _pack_toeplitz(w2, W, W, -1, C1_PAD, C2)                   # (3, L1, L2)
    b2m = jnp.tile(b2, W).reshape(1, L2).astype(jnp.float32)

    weight_bytes = 2 * (w1m.size + w2m.size)
    vmem_cap = _vmem_capacity()
    nb, per_img = _pick_batch_block(N, H, W, weight_bytes, vmem_cap)
    vmem_limit = int(min(0.75 * vmem_cap, 2 * weight_bytes + nb * per_img + (16 << 20)))

    out = pl.pallas_call(
        _fused_kernel,
        out_shape=jax.ShapeDtypeStruct((N * H, L2), jnp.float32),
        grid_spec=pltpu.PrefetchScalarGridSpec(
            num_scalar_prefetch=0,
            grid=(N // nb,),
            in_specs=[
                pl.BlockSpec((nb, H + 2, Lin), lambda n: (n, 0, 0)),
                pl.BlockSpec((KH, Lin, L1), lambda n: (0, 0, 0)),
                pl.BlockSpec((1, L1), lambda n: (0, 0)),
                pl.BlockSpec((KH, L1, L2), lambda n: (0, 0, 0)),
                pl.BlockSpec((1, L2), lambda n: (0, 0)),
            ],
            out_specs=pl.BlockSpec((nb * H, L2), lambda n: (n, 0)),
        ),
        compiler_params=pltpu.CompilerParams(
            dimension_semantics=("parallel",),
            vmem_limit_bytes=vmem_limit,
        ),
    )(x, w1m, b1m, w2m, b2m)

    # Crop the over-computed row/col, split lanes back into (W, C2), go to NCHW.
    out = out.reshape(N, H, W, C2)[:, :Ho, :Wo, :]
    return jnp.transpose(out, (0, 3, 1, 2))


def reference(x, w1, b1, w2, b2):
    y = lax.conv_general_dilated(
        x, w1, (1, 1), ((1, 1), (1, 1)),
        dimension_numbers=("NCHW", "OIHW", "NCHW"),
        precision=lax.Precision.HIGHEST) + b1[None, :, None, None]
    y = lax.reduce_window(y, -jnp.inf, lax.max, (1, 1, 2, 2), (1, 1, 1, 1), "VALID")
    y = lax.conv_general_dilated(
        y, w2, (1, 1), ((1, 1), (1, 1)),
        dimension_numbers=("NCHW", "OIHW", "NCHW"),
        precision=lax.Precision.HIGHEST) + b2[None, :, None, None]
    return y


if __name__ == "__main__":
    key = jax.random.PRNGKey(0)
    kx, k1, kb1, k2, kb2 = jax.random.split(key, 5)

    # Small shapes consistent with the module (N, C=3, H, W).
    N, H, W = 2, 16, 16
    x = jax.random.normal(kx, (N, CIN, H, W), jnp.float32)

    fan1 = CIN * KH * KW
    w1 = jax.random.uniform(k1, (C1, CIN, KH, KW), jnp.float32, -1.0, 1.0) / np.sqrt(fan1)
    b1 = jax.random.uniform(kb1, (C1,), jnp.float32, -1.0, 1.0) / np.sqrt(fan1)
    fan2 = C1 * KH * KW
    w2 = jax.random.uniform(k2, (C2, C1, KH, KW), jnp.float32, -1.0, 1.0) / np.sqrt(fan2)
    b2 = jax.random.uniform(kb2, (C2,), jnp.float32, -1.0, 1.0) / np.sqrt(fan2)

    out = jax.block_until_ready(fused_forward(x, w1, b1, w2, b2))
    assert out.shape == (N, C2, H - 1, W - 1), out.shape

    ref = jax.block_until_ready(reference(x, w1, b1, w2, b2))
    # Intentional: the kernel runs both convs with bf16 MXU operands (single
    # pass) while the reference is f32 HIGHEST precision, so ~1e-2-level
    # absolute error is expected.
    np.testing.assert_allclose(np.asarray(out), np.asarray(ref), rtol=3e-2, atol=3e-2)

    print("KERNEL_OK")
</pallas_src>

<mosaic_0001>
module attributes {stable_mosaic.version = 11 : i64} {
  func.func @_fused_kernel(%arg0: i32, %arg1: memref<1x18x54xbf16, #tpu.memory_space<vmem>>, %arg2: memref<3x54x128xbf16, #tpu.memory_space<vmem>>, %arg3: memref<1x128xf32, #tpu.memory_space<vmem>>, %arg4: memref<3x128x256xbf16, #tpu.memory_space<vmem>>, %arg5: memref<1x256xf32, #tpu.memory_space<vmem>>, %arg6: memref<16x256xf32, #tpu.memory_space<vmem>>) attributes {dimension_semantics = [#tpu.dimension_semantics<parallel>], iteration_bounds = array<i64: 2>, scalar_prefetch = 0 : i64, scratch_operands = 0 : i64, tpu.core_type = #tpu.core_type<tc>, window_params = [{transform_indices = @transform_0, window_bounds = array<i64: 1, 18, 54>}, {pipeline_mode = #tpu.pipeline_mode<synchronous>, transform_indices = @transform_1, window_bounds = array<i64: 3, 54, 128>}, {pipeline_mode = #tpu.pipeline_mode<synchronous>, transform_indices = @transform_2, window_bounds = array<i64: 1, 128>}, {pipeline_mode = #tpu.pipeline_mode<synchronous>, transform_indices = @transform_3, window_bounds = array<i64: 3, 128, 256>}, {pipeline_mode = #tpu.pipeline_mode<synchronous>, transform_indices = @transform_4, window_bounds = array<i64: 1, 256>}, {transform_indices = @transform_5, window_bounds = array<i64: 16, 256>}]} {
    %c0 = arith.constant 0 : index
    %c0_0 = arith.constant 0 : index
    %c0_1 = arith.constant 0 : index
    %0 = vector.load %arg1[%c0, %c0_0, %c0_1] : memref<1x18x54xbf16, #tpu.memory_space<vmem>>, vector<1x18x54xbf16>
    %c0_2 = arith.constant 0 : index
    %c0_3 = arith.constant 0 : index
    %1 = vector.load %arg3[%c0_2, %c0_3] : memref<1x128xf32, #tpu.memory_space<vmem>>, vector<1x128xf32>
    %2 = vector.extract_strided_slice %0 {offsets = [0, 0, 0], sizes = [1, 16, 54], strides = [1, 1, 1]} : vector<1x18x54xbf16> to vector<1x16x54xbf16>
    %3 = vector.shape_cast %2 : vector<1x16x54xbf16> to vector<16x54xbf16>
    %c0_4 = arith.constant 0 : index
    %c0_5 = arith.constant 0 : index
    %c0_6 = arith.constant 0 : index
    %4 = vector.load %arg2[%c0_4, %c0_5, %c0_6] : memref<3x54x128xbf16, #tpu.memory_space<vmem>>, vector<1x54x128xbf16>
    %5 = vector.shape_cast %4 : vector<1x54x128xbf16> to vector<54x128xbf16>
    %cst = arith.constant dense<0.000000e+00> : vector<16x128xf32>
    %6 = tpu.matmul %3, %5, %cst {dimension_numbers = #tpu.dot_dimension_numbers<[1], [0], [0], [1], [0, 0, 1, 1], [], []>} : vector<16x54xbf16>, vector<54x128xbf16>, vector<16x128xf32> -> vector<16x128xf32>
    %7 = vector.broadcast %1 : vector<1x128xf32> to vector<16x128xf32>
    %8 = arith.addf %7, %6 : vector<16x128xf32>
    %9 = vector.extract_strided_slice %0 {offsets = [0, 1, 0], sizes = [1, 16, 54], strides = [1, 1, 1]} : vector<1x18x54xbf16> to vector<1x16x54xbf16>
    %10 = vector.shape_cast %9 : vector<1x16x54xbf16> to vector<16x54xbf16>
    %c1 = arith.constant 1 : index
    %c0_7 = arith.constant 0 : index
    %c0_8 = arith.constant 0 : index
    %11 = vector.load %arg2[%c1, %c0_7, %c0_8] : memref<3x54x128xbf16, #tpu.memory_space<vmem>>, vector<1x54x128xbf16>
    %12 = vector.shape_cast %11 : vector<1x54x128xbf16> to vector<54x128xbf16>
    %cst_9 = arith.constant dense<0.000000e+00> : vector<16x128xf32>
    %13 = tpu.matmul %10, %12, %cst_9 {dimension_numbers = #tpu.dot_dimension_numbers<[1], [0], [0], [1], [0, 0, 1, 1], [], []>} : vector<16x54xbf16>, vector<54x128xbf16>, vector<16x128xf32> -> vector<16x128xf32>
    %14 = arith.addf %8, %13 : vector<16x128xf32>
    %15 = vector.extract_strided_slice %0 {offsets = [0, 2, 0], sizes = [1, 16, 54], strides = [1, 1, 1]} : vector<1x18x54xbf16> to vector<1x16x54xbf16>
    %16 = vector.shape_cast %15 : vector<1x16x54xbf16> to vector<16x54xbf16>
    %c2 = arith.constant 2 : index
    %c0_10 = arith.constant 0 : index
    %c0_11 = arith.constant 0 : index
    %17 = vector.load %arg2[%c2, %c0_10, %c0_11] : memref<3x54x128xbf16, #tpu.memory_space<vmem>>, vector<1x54x128xbf16>
    %18 = vector.shape_cast %17 : vector<1x54x128xbf16> to vector<54x128xbf16>
    %cst_12 = arith.constant dense<0.000000e+00> : vector<16x128xf32>
    %19 = tpu.matmul %16, %18, %cst_12 {dimension_numbers = #tpu.dot_dimension_numbers<[1], [0], [0], [1], [0, 0, 1, 1], [], []>} : vector<16x54xbf16>, vector<54x128xbf16>, vector<16x128xf32> -> vector<16x128xf32>
    %20 = arith.addf %14, %19 : vector<16x128xf32>
    %c120_i32 = arith.constant 120 : i32
    %21 = tpu.dynamic_rotate %20 by %c120_i32 dim 1 : vector<16x128xf32>, i32 -> vector<16x128xf32>
    %22 = arith.maximumf %20, %21 : vector<16x128xf32>
    %23 = vector.shape_cast %22 : vector<16x128xf32> to vector<1x16x128xf32>
    %24 = vector.extract_strided_slice %23 {offsets = [0, 0, 0], sizes = [1, 15, 128], strides = [1, 1, 1]} : vector<1x16x128xf32> to vector<1x15x128xf32>
    %25 = vector.extract_strided_slice %23 {offsets = [0, 1, 0], sizes = [1, 15, 128], strides = [1, 1, 1]} : vector<1x16x128xf32> to vector<1x15x128xf32>
    %26 = arith.maximumf %24, %25 : vector<1x15x128xf32>
    %27 = tpu.iota {dimensions = array<i32: 2>} : vector<1x15x128xi32>
    %c120_i32_13 = arith.constant 120 : i32
    %28 = vector.broadcast %c120_i32_13 : i32 to vector<1x15x128xi32>
    %29 = arith.cmpi slt, %27, %28 : vector<1x15x128xi32>
    %cst_14 = arith.constant 0.000000e+00 : f32
    %30 = vector.broadcast %cst_14 : f32 to vector<1x15x128xf32>
    %31 = arith.select %29, %26, %30 : vector<1x15x128xi1>, vector<1x15x128xf32>
    %cst_15 = arith.constant 0.000000e+00 : f32
    %32 = vector.broadcast %cst_15 : f32 to vector<1x1x128xf32>
    %cst_16 = arith.constant 0.000000e+00 : f32
    %33 = vector.broadcast %cst_16 : f32 to vector<1x2x128xf32>
    %34 = tpu.concatenate %32, %31, %33 in 1 : vector<1x1x128xf32>, vector<1x15x128xf32>, vector<1x2x128xf32> -> vector<1x18x128xf32>
    %35 = arith.truncf %34 : vector<1x18x128xf32> to vector<1x18x128xbf16>
    %c0_17 = arith.constant 0 : index
    %c0_18 = arith.constant 0 : index
    %36 = vector.load %arg5[%c0_17, %c0_18] : memref<1x256xf32, #tpu.memory_space<vmem>>, vector<1x256xf32>
    %37 = vector.extract_strided_slice %35 {offsets = [0, 0, 0], sizes = [1, 16, 128], strides = [1, 1, 1]} : vector<1x18x128xbf16> to vector<1x16x128xbf16>
    %38 = vector.shape_cast %37 : vector<1x16x128xbf16> to vector<16x128xbf16>
    %c0_19 = arith.constant 0 : index
    %c0_20 = arith.constant 0 : index
    %c0_21 = arith.constant 0 : index
    %39 = vector.load %arg4[%c0_19, %c0_20, %c0_21] : memref<3x128x256xbf16, #tpu.memory_space<vmem>>, vector<1x128x256xbf16>
    %40 = vector.shape_cast %39 : vector<1x128x256xbf16> to vector<128x256xbf16>
    %cst_22 = arith.constant dense<0.000000e+00> : vector<16x256xf32>
    %41 = tpu.matmul %38, %40, %cst_22 {dimension_numbers = #tpu.dot_dimension_numbers<[1], [0], [0], [1], [0, 0, 1, 1], [], []>} : vector<16x128xbf16>, vector<128x256xbf16>, vector<16x256xf32> -> vector<16x256xf32>
    %42 = vector.broadcast %36 : vector<1x256xf32> to vector<16x256xf32>
    %43 = arith.addf %42, %41 : vector<16x256xf32>
    %44 = vector.extract_strided_slice %35 {offsets = [0, 1, 0], sizes = [1, 16, 128], strides = [1, 1, 1]} : vector<1x18x128xbf16> to vector<1x16x128xbf16>
    %45 = vector.shape_cast %44 : vector<1x16x128xbf16> to vector<16x128xbf16>
    %c1_23 = arith.constant 1 : index
    %c0_24 = arith.constant 0 : index
    %c0_25 = arith.constant 0 : index
    %46 = vector.load %arg4[%c1_23, %c0_24, %c0_25] : memref<3x128x256xbf16, #tpu.memory_space<vmem>>, vector<1x128x256xbf16>
    %47 = vector.shape_cast %46 : vector<1x128x256xbf16> to vector<128x256xbf16>
    %cst_26 = arith.constant dense<0.000000e+00> : vector<16x256xf32>
    %48 = tpu.matmul %45, %47, %cst_26 {dimension_numbers = #tpu.dot_dimension_numbers<[1], [0], [0], [1], [0, 0, 1, 1], [], []>} : vector<16x128xbf16>, vector<128x256xbf16>, vector<16x256xf32> -> vector<16x256xf32>
    %49 = arith.addf %43, %48 : vector<16x256xf32>
    %50 = vector.extract_strided_slice %35 {offsets = [0, 2, 0], sizes = [1, 16, 128], strides = [1, 1, 1]} : vector<1x18x128xbf16> to vector<1x16x128xbf16>
    %51 = vector.shape_cast %50 : vector<1x16x128xbf16> to vector<16x128xbf16>
    %c2_27 = arith.constant 2 : index
    %c0_28 = arith.constant 0 : index
    %c0_29 = arith.constant 0 : index
    %52 = vector.load %arg4[%c2_27, %c0_28, %c0_29] : memref<3x128x256xbf16, #tpu.memory_space<vmem>>, vector<1x128x256xbf16>
    %53 = vector.shape_cast %52 : vector<1x128x256xbf16> to vector<128x256xbf16>
    %cst_30 = arith.constant dense<0.000000e+00> : vector<16x256xf32>
    %54 = tpu.matmul %51, %53, %cst_30 {dimension_numbers = #tpu.dot_dimension_numbers<[1], [0], [0], [1], [0, 0, 1, 1], [], []>} : vector<16x128xbf16>, vector<128x256xbf16>, vector<16x256xf32> -> vector<16x256xf32>
    %55 = arith.addf %49, %54 : vector<16x256xf32>
    %c0_31 = arith.constant 0 : index
    %c0_32 = arith.constant 0 : index
    %56 = vector.load %arg6[%c0_31, %c0_32] : memref<16x256xf32, #tpu.memory_space<vmem>>, vector<16x256xf32>
    tpu.vector_store %arg6[%c0_31, %c0_32], %55 {strides = array<i32>} : memref<16x256xf32, #tpu.memory_space<vmem>>, vector<16x256xf32>,
    return
  }
  func.func @transform_0(%arg0: i32) -> (i32, i32, i32) {
    %c0_i32 = arith.constant 0 : i32
    %c0_i32_0 = arith.constant 0 : i32
    %c0_i32_1 = arith.constant 0 : i32
    return %arg0, %c0_i32, %c0_i32_0 : i32, i32, i32
  }
  func.func @transform_1(%arg0: i32) -> (i32, i32, i32) {
    %c0_i32 = arith.constant 0 : i32
    %c0_i32_0 = arith.constant 0 : i32
    %c0_i32_1 = arith.constant 0 : i32
    %c0_i32_2 = arith.constant 0 : i32
    return %c0_i32, %c0_i32_0, %c0_i32_1 : i32, i32, i32
  }
  func.func @transform_2(%arg0: i32) -> (i32, i32) {
    %c0_i32 = arith.constant 0 : i32
    %c0_i32_0 = arith.constant 0 : i32
    %c0_i32_1 = arith.constant 0 : i32
    return %c0_i32, %c0_i32_0 : i32, i32
  }
  func.func @transform_3(%arg0: i32) -> (i32, i32, i32) {
    %c0_i32 = arith.constant 0 : i32
    %c0_i32_0 = arith.constant 0 : i32
    %c0_i32_1 = arith.constant 0 : i32
    %c0_i32_2 = arith.constant 0 : i32
    return %c0_i32, %c0_i32_0, %c0_i32_1 : i32, i32, i32
  }
  func.func @transform_4(%arg0: i32) -> (i32, i32) {
    %c0_i32 = arith.constant 0 : i32
    %c0_i32_0 = arith.constant 0 : i32
    %c0_i32_1 = arith.constant 0 : i32
    return %c0_i32, %c0_i32_0 : i32, i32
  }
  func.func @transform_5(%arg0: i32) -> (i32, i32) {
    %c0_i32 = arith.constant 0 : i32
    %c0_i32_0 = arith.constant 0 : i32
    return %arg0, %c0_i32 : i32, i32
  }
}

</mosaic_0001>

<llo_original>
// kernel: tpu_custom_call.1
$region0: #{tpu_custom_call.1}
  #allocation0 [shape = 'u32[]', space=smem, size = 0x4, offset = 0x4, fixed_abs, tag = 'smem constant byte address 0x4 - core index']
  #allocation1 [shape = 'u32[144,128]{1,0:T(1,128)}', space=vmem, size = 0x12000, scoped, tag = 'internal scratch']
  %s0 = inlined_call_operand.vmem [shape: bf16[2,18,54], index: 0, kind: input, shape index: {}]
  %s1 = inlined_call_operand.hbm [shape: bf16[3,54,128], index: 1, kind: input, shape index: {}]
  %s2 = inlined_call_operand.vmem [shape: f32[1,128], index: 2, kind: input, shape index: {}]
  %s3 = inlined_call_operand.hbm [shape: bf16[3,128,256], index: 3, kind: input, shape index: {}]
  %s4 = inlined_call_operand.vmem [shape: f32[1,256], index: 4, kind: input, shape index: {}]
  %s5 = inlined_call_operand.hbm [shape: f32[32,256], index: 5, kind: output, shape index: {}]
  %s6 = sld [smem:[#allocation0]]
  $region61: #{tpu_custom_call.1} parent=0
    _
  %s8 = ssub.s32 1, %s6
  %s9 = scalar_select 0, %s8, %s6
  $region1: #{tpu_custom_call.1} parent=0
    #allocation2 [shape = 'u8[43008]{0}', space=vmem, size = 0xa800, scoped, tag = 'input window, operand 1, single buffered']
    #allocation3 [shape = 's32[2]{0}', space=sflag, size = 0x8, scoped, tag = 'scoped memory for tpu_custom_call.1']
    #allocation4 [shape = 's32[2]{0}', space=sflag, size = 0x8, scoped, tag = 'scoped memory for tpu_custom_call.1']
    #allocation5 [shape = 'u8[196608]{0}', space=vmem, size = 0x30000, scoped, tag = 'input window, operand 3, single buffered']
    #allocation6 [shape = 's32[1]{0}', space=sflag, size = 0x4, scoped, tag = 'scoped memory for tpu_custom_call.1']
    #allocation7 [shape = 'u8[32768]{0}', space=vmem, size = 0x8000, scoped, tag = 'output window, operand 0']
    %10 = vsyncpa [#allocation3], 0
    %11 = vsyncpa [#allocation6], 0
    %12 = vsyncpa [#allocation4], 0
    %s13 = scalar_lea.sflag [#allocation4], 1
    %14 = vsyncpa %s13, 0
    loop: start=0, step=1, limit=4
    $region2: #{tpu_custom_call.1} parent=1 // loop_pre_header
      _
    $region3: #{tpu_custom_call.1} parent=1 // loop_header
      %s16 = sphi 0, %s20
      %p17 = scmp.ge.s32.totalorder %s16, 4
      %s26 = sphi 0, %s28
      %s29 = sphi 0, %s26
      %s30 = sphi 0, %s29
      %s46 = sphi 0, %s30
      %s50 = sphi 0, %s50
      %s52 = sphi 0, %s50
      %s53 = sphi 0, %s52
      %s67 = sphi 0, %s53
      %s71 = sphi 0, %s71
      %s73 = sphi 0, %s71
      %s74 = sphi 0, %s73
      %s88 = sphi 0, %s74
      %s92 = sphi 0, %s92
      %s94 = sphi 0, %s92
      %s95 = sphi 0, %s94
      %s109 = sphi 0, %s95
      %s113 = sphi 0, %s113
      %s115 = sphi 0, %s113
      %s116 = sphi 0, %s115
      %s130 = sphi 0, %s116
      %s136 = sphi 0, %s138
      %s139 = sphi 0, %s136
      %s140 = sphi 0, %s139
      %s156 = sphi 0, %s140
    $region4: #{tpu_custom_call.1} parent=1 // loop_header_branch
      %19 = sbr.rel (%p17) target = $region8
    $region5: #{tpu_custom_call.1} parent=1 // loop_body
      %s21 = ssub.s32 %s16, 1
      %s22 = ssub.s32 %s16, 2
      %s23 = sadd.s32 %s16, 1
      %s24 = ssub.s32 %s16, %s23
      %p25 = scmp.eq.s32.totalorder %s24, 0
      %s27 = sadd.s32 %s26, 1
      %s28 = scalar_select %p25, %s26, %s27
      %p31 = pneg %p25
      %p32 = scmp.eq.s32.totalorder %s16, 1
      %p33 = por %p31, %p32
      %p34 = scmp.ne.s32.totalorder %s26, %s29
      %p35 = scmp.eq.s32.totalorder %s16, 0
      %p36 = por %p34, %p35
      %p37 = scmp.ne.s32.totalorder %s26, %s29
      %p38 = scmp.eq.s32.totalorder %s21, 1
      %p39 = por %p37, %p38
      %p40 = scmp.ne.s32.totalorder %s29, %s30
      %p41 = scmp.eq.s32.totalorder %s21, 0
      %p42 = por %p40, %p41
      %p43 = scmp.ne.s32.totalorder %s29, %s30
      %p44 = scmp.eq.s32.totalorder %s22, 1
      %p45 = por %p43, %p44
      %p47 = scmp.ne.s32.totalorder %s30, %s46
      %p48 = scmp.eq.s32.totalorder %s22, 0
      %p49 = por %p47, %p48
      %s51 = sadd.s32 %s50, 1
      %p54 = scmp.eq.s32.totalorder %s16, 1
      %p55 = scmp.ne.s32.totalorder %s50, %s52
      %p56 = scmp.eq.s32.totalorder %s16, 0
      %p57 = por %p55, %p56
      %p58 = scmp.ne.s32.totalorder %s50, %s52
      %p59 = scmp.eq.s32.totalorder %s21, 1
      %p60 = por %p58, %p59
      %p61 = scmp.ne.s32.totalorder %s52, %s53
      %p62 = scmp.eq.s32.totalorder %s21, 0
      %p63 = por %p61, %p62
      %p64 = scmp.ne.s32.totalorder %s52, %s53
      %p65 = scmp.eq.s32.totalorder %s22, 1
      %p66 = por %p64, %p65
      %p68 = scmp.ne.s32.totalorder %s53, %s67
      %p69 = scmp.eq.s32.totalorder %s22, 0
      %p70 = por %p68, %p69
      %s72 = sadd.s32 %s71, 1
      %p75 = scmp.eq.s32.totalorder %s16, 1
      %p76 = scmp.ne.s32.totalorder %s71, %s73
      %p77 = scmp.eq.s32.totalorder %s16, 0
      %p78 = por %p76, %p77
      %p79 = scmp.ne.s32.totalorder %s71, %s73
      %p80 = scmp.eq.s32.totalorder %s21, 1
      %p81 = por %p79, %p80
      %p82 = scmp.ne.s32.totalorder %s73, %s74
      %p83 = scmp.eq.s32.totalorder %s21, 0
      %p84 = por %p82, %p83
      %p85 = scmp.ne.s32.totalorder %s73, %s74
      %p86 = scmp.eq.s32.totalorder %s22, 1
      %p87 = por %p85, %p86
      %p89 = scmp.ne.s32.totalorder %s74, %s88
      %p90 = scmp.eq.s32.totalorder %s22, 0
      %p91 = por %p89, %p90
      %s93 = sadd.s32 %s92, 1
      %p96 = scmp.eq.s32.totalorder %s16, 1
      %p97 = scmp.ne.s32.totalorder %s92, %s94
      %p98 = scmp.eq.s32.totalorder %s16, 0
      %p99 = por %p97, %p98
      %p100 = scmp.ne.s32.totalorder %s92, %s94
      %p101 = scmp.eq.s32.totalorder %s21, 1
      %p102 = por %p100, %p101
      %p103 = scmp.ne.s32.totalorder %s94, %s95
      %p104 = scmp.eq.s32.totalorder %s21, 0
      %p105 = por %p103, %p104
      %p106 = scmp.ne.s32.totalorder %s94, %s95
      %p107 = scmp.eq.s32.totalorder %s22, 1
      %p108 = por %p106, %p107
      %p110 = scmp.ne.s32.totalorder %s95, %s109
      %p111 = scmp.eq.s32.totalorder %s22, 0
      %p112 = por %p110, %p111
      %s114 = sadd.s32 %s113, 1
      %p117 = scmp.eq.s32.totalorder %s16, 1
      %p118 = scmp.ne.s32.totalorder %s113, %s115
      %p119 = scmp.eq.s32.totalorder %s16, 0
      %p120 = por %p118, %p119
      %p121 = scmp.ne.s32.totalorder %s113, %s115
      %p122 = scmp.eq.s32.totalorder %s21, 1
      %p123 = por %p121, %p122
      %p124 = scmp.ne.s32.totalorder %s115, %s116
      %p125 = scmp.eq.s32.totalorder %s21, 0
      %p126 = por %p124, %p125
      %p127 = scmp.ne.s32.totalorder %s115, %s116
      %p128 = scmp.eq.s32.totalorder %s22, 1
      %p129 = por %p127, %p128
      %p131 = scmp.ne.s32.totalorder %s116, %s130
      %p132 = scmp.eq.s32.totalorder %s22, 0
      %p133 = por %p131, %p132
      %s134 = ssub.s32 %s16, %s23
      %p135 = scmp.eq.s32.totalorder %s134, 0
      %s137 = sadd.s32 %s136, 1
      %s138 = scalar_select %p135, %s136, %s137
      %p141 = pneg %p135
      %p142 = scmp.eq.s32.totalorder %s16, 1
      %p143 = por %p141, %p142
      %p144 = scmp.ne.s32.totalorder %s136, %s139
      %p145 = scmp.eq.s32.totalorder %s16, 0
      %p146 = por %p144, %p145
      %p147 = scmp.ne.s32.totalorder %s136, %s139
      %p148 = scmp.eq.s32.totalorder %s21, 1
      %p149 = por %p147, %p148
      %p150 = scmp.ne.s32.totalorder %s139, %s140
      %p151 = scmp.eq.s32.totalorder %s21, 0
      %p152 = por %p150, %p151
      %p153 = scmp.ne.s32.totalorder %s139, %s140
      %p154 = scmp.eq.s32.totalorder %s22, 1
      %p155 = por %p153, %p154
      %p157 = scmp.ne.s32.totalorder %s140, %s156
      %p158 = scmp.eq.s32.totalorder %s22, 0
      %p159 = por %p157, %p158
      %p160 = scmp.le.s32.totalorder 1, %s16
      %p161 = scmp.lt.s32.totalorder %s16, 3
      %p162 = pnand %p160, %p161
      %p163 = pneg %p162
      // Predicated region
      $region9: #{tpu_custom_call.1} parent=5 // pred_check
        _
      $region10: #{tpu_custom_call.1} parent=5 // pred_check_branch
        %165 = sbr.rel (%p162) target = $region12
      $region11: #{tpu_custom_call.1} parent=5 // pred_region
        %s166 = ssub.s32 %s16, 1
        // Predicated region
        $region13: #{tpu_custom_call.1} parent=11 // pred_check
          %p167 = pneg %p63
        $region14: #{tpu_custom_call.1} parent=11 // pred_check_branch
          %169 = sbr.rel (%p167) target = $region16
        $region15: #{tpu_custom_call.1} parent=11 // pred_region
          %s171 = ssub.s32 1344, 1344
          %172 = vsyncadd [#allocation3], %s171
          %s173 = sshll.u32 [#allocation2], 4
          %s174 = int_to_ptr.vmem [resolvable:$true] %s173
          %179 = dma.hbm_to_vmem [thread:$0]  %s1, 1344, %s174, [#allocation3], 64, 64, 4
        $region16: #{tpu_custom_call.1} parent=11 // pred_fallthru
          _
        // Predicated region
        $region17: #{tpu_custom_call.1} parent=11 // pred_check
          %p180 = pneg %p84
        $region18: #{tpu_custom_call.1} parent=11 // pred_check_branch
          %182 = sbr.rel (%p180) target = $region20
        $region19: #{tpu_custom_call.1} parent=11 // pred_region
          _
        $region20: #{tpu_custom_call.1} parent=11 // pred_fallthru
          _
        // Predicated region
        $region21: #{tpu_custom_call.1} parent=11 // pred_check
          %p183 = pneg %p105
        $region22: #{tpu_custom_call.1} parent=11 // pred_check_branch
          %185 = sbr.rel (%p183) target = $region24
        $region23: #{tpu_custom_call.1} parent=11 // pred_region
          %s187 = ssub.s32 6144, 6144
          %188 = vsyncadd [#allocation6], %s187
          %s189 = sshll.u32 [#allocation5], 4
          %s190 = int_to_ptr.vmem [resolvable:$true] %s189
          %195 = dma.hbm_to_vmem [thread:$0]  %s3, 6144, %s190, [#allocation6], 128, 128, 8
        $region24: #{tpu_custom_call.1} parent=11 // pred_fallthru
          _
        // Predicated region
        $region25: #{tpu_custom_call.1} parent=11 // pred_check
          %p196 = pneg %p126
        $region26: #{tpu_custom_call.1} parent=11 // pred_check_branch
          %198 = sbr.rel (%p196) target = $region28
        $region27: #{tpu_custom_call.1} parent=11 // pred_region
          _
        $region28: #{tpu_custom_call.1} parent=11 // pred_fallthru
          _
      $region12: #{tpu_custom_call.1} parent=5 // pred_fallthru
        _
      %p199 = scmp.lt.s32.totalorder %s16, 2
      // Predicated region
      $region29: #{tpu_custom_call.1} parent=5 // pred_check
        %p200 = pneg %p199
      $region30: #{tpu_custom_call.1} parent=5 // pred_check_branch
        %202 = sbr.rel (%p200) target = $region32
      $region31: #{tpu_custom_call.1} parent=5 // pred_region
        // Predicated region
        $region33: #{tpu_custom_call.1} parent=31 // pred_check
          %p203 = pneg %p36
        $region34: #{tpu_custom_call.1} parent=31 // pred_check_branch
          %205 = sbr.rel (%p203) target = $region36
        $region35: #{tpu_custom_call.1} parent=31 // pred_region
          %p206 = scmp.lt.s32.totalorder %s16, 1
          %s207 = scalar_select %p206, %s16, 1
          %s208 = smul.addr %s207, 3
          %s209 = smul.addr %s208, 4
          %s210 = scalar_lea.vmem %s0, %s209
        $region36: #{tpu_custom_call.1} parent=31 // pred_fallthru
          _
      $region32: #{tpu_custom_call.1} parent=5 // pred_fallthru
        _
      %p211 = scmp.le.s32.totalorder 1, %s16
      %p212 = scmp.lt.s32.totalorder %s16, 3
      %p213 = pnand %p211, %p212
      %p214 = pneg %p213
      // Predicated region
      $region37: #{tpu_custom_call.1} parent=5 // pred_check
        _
      $region38: #{tpu_custom_call.1} parent=5 // pred_check_branch
        %216 = sbr.rel (%p213) target = $region40
      $region39: #{tpu_custom_call.1} parent=5 // pred_region
        %s217 = ssub.s32 %s16, 1
        // Predicated region
        $region41: #{tpu_custom_call.1} parent=39 // pred_check
          %p218 = pneg %p63
        $region42: #{tpu_custom_call.1} parent=39 // pred_check_branch
          %220 = sbr.rel (%p218) target = $region44
        $region43: #{tpu_custom_call.1} parent=39 // pred_region
          %221 = dma.done [#allocation3], 1344
        $region44: #{tpu_custom_call.1} parent=39 // pred_fallthru
          _
        // Predicated region
        $region45: #{tpu_custom_call.1} parent=39 // pred_check
          %p222 = pneg %p105
        $region46: #{tpu_custom_call.1} parent=39 // pred_check_branch
          %224 = sbr.rel (%p222) target = $region48
        $region47: #{tpu_custom_call.1} parent=39 // pred_region
          %225 = dma.done [#allocation6], 6144
        $region48: #{tpu_custom_call.1} parent=39 // pred_fallthru
          _
        %p226 = scmp.lt.s32.totalorder %s21, 1
        %s227 = scalar_select %p226, %s21, 1
        %s228 = smul.addr %s227, 3
        %s229 = smul.addr %s228, 4
        %s230 = scalar_lea.vmem %s0, %s229
        %p231 = pneg %p42
        %p232 = pneg %p39
        %p233 = pneg %p63
        %p234 = pneg %p60
        %p235 = pneg %p84
        %p236 = pneg %p81
        %p237 = pneg %p105
        %p238 = pneg %p102
        %p239 = pneg %p126
        %p240 = pneg %p123
        %p241 = pneg %p152
        %p242 = pneg %p149
        %s243 = sand.u32 %s139, 1
        %s244 = scalar_lea.sflag [#allocation4], %s243
        %s245 = sand.u32 %s139, 1
        %s246 = smul.addr %s245, 32
        %s247 = scalar_lea.vmem [#allocation7], %s246
        %p248 = scmp.lt.s32.totalorder %s21, 1
        %s249 = scalar_select %p248, %s21, 1
        %s250 = smul.addr %s249, 3
        %s251 = smul.addr %s250, 4
        %s252 = scalar_lea.vmem %s0, %s251
        %s253 = smul.u32 2, %s21
        %v255 = vld [vmem:[%s252] sm:$0xf]
        %v256 = vld [vmem:[%s252 + $0x4] sm:$0xf]
        %v257 = vld [vmem:[%s252 + $0x8] sm:$0x1]
        %v258 = vld [vmem:[%s2] sm:$0x1]
        %v259 = vld [vmem:[#allocation2] sm:$0xf]
        %v260 = vld [vmem:[#allocation2 + $0x4] sm:$0xf]
        %v261 = vld [vmem:[#allocation2 + $0x8] sm:$0xf]
        %v262 = vld [vmem:[#allocation2 + $0xc] sm:$0xf]
        %v263 = vld [vmem:[#allocation2 + $0x10] sm:$0xf]
        %v264 = vld [vmem:[#allocation2 + $0x14] sm:$0xf]
        %v265 = vld [vmem:[#allocation2 + $0x18] sm:$0x7]
        %v268 = vunpack.c.l.b16 %v255
        %v269 = vunpack.c.l.b16 %v256
        %v270 = vpack.c.b16 %v269, %v268
        %v278 = vunpack.c.l.b16 %v259
        %v279 = vunpack.c.l.b16 %v260
        %v280 = vunpack.c.l.b16 %v261
        %v281 = vunpack.c.l.b16 %v262
        %v282 = vunpack.c.l.b16 %v263
        %v283 = vunpack.c.l.b16 %v264
        %v284 = vunpack.c.l.b16 %v265
        %v285 = vpack.c.b16 %v279, %v278
        %v286 = vpack.c.b16 %v281, %v280
        %v287 = vpack.c.b16 %v283, %v282
        %v288 = vpack.c.b16 %v284, %v284
        %vm292 = vcmask 441344
        %v294 = vsel %vm292, %v270, 0
        %vm296 = vcmask 1042432
        %v298 = vsel %vm296, %v288, 0
        %300 = vmatprep.subr.bf16.mxu0 0
        %301 = vmatpush1.bf16.msra.mxu0 %v285
        %302 = vmatprep.subr.bf16.mxu0 0
        %303 = vmatpush1.bf16.msra.mxu0 %v286
        %304 = vmatprep.subr.bf16.mxu0 0
        %305 = vmatpush1.bf16.msra.mxu0 %v287
        %306 = vmatprep.subr.bf16.mxu0 0
        %307 = vmatpush1.bf16.msra.mxu0 %v298
        %308 = vmatprep.subr.bf16.mxu0 0
        %309 = vmatpush1.bf16.msra.mxu0 0
        %310 = vmatprep.subr.bf16.mxu0 0
        %311 = vmatpush1.bf16.msra.mxu0 0
        %312 = vmatprep.subr.bf16.mxu0 0
        %313 = vmatpush1.bf16.msra.mxu0 0
        %314 = vmatprep.subr.bf16.mxu0 0
        %315 = vmatpush1.bf16.msra.mxu0 0
        %316 = vmatprep.subr.bf16.mxu0 0
        %317 = vmatpush1.bf16.msra.mxu0 0
        %318 = vmatprep.subr.bf16.mxu0 0
        %319 = vmatpush1.bf16.msra.mxu0 0
        %320 = vmatprep.subr.bf16.mxu0 0
        %321 = vmatpush1.bf16.msra.mxu0 0
        %322 = vmatprep.subr.bf16.mxu0 0
        %323 = vmatpush1.bf16.msra.mxu0 0
        %324 = vmatprep.subr.bf16.mxu0 0
        %325 = vmatpush1.bf16.msra.mxu0 0
        %326 = vmatprep.subr.bf16.mxu0 0
        %327 = vmatpush1.bf16.msra.mxu0 0
        %328 = vmatprep.subr.bf16.mxu0 0
        %329 = vmatpush1.bf16.msra.mxu0 0
        %330 = vmatprep.subr.bf16.mxu0 0
        %331 = vmatpush1.bf16.msra.mxu0 0
        %332 = vmatprep.mubr.bf16.mxu0 0
        %333 = vmatmul.mubr.bf16.gmra.mrb[0].mxu0 %v294
        %v334 = vpop.f32.mrb[0].mxu0
        %v335 = vadd.f32 0.0, %v334
        %v336 = vpop.f32.mrb[0].mxu0
        %v337 = vpop.f32.mrb[0].mxu0
        %v338 = vadd.f32 0.0, %v337
        %v339 = vpop.f32.mrb[0].mxu0
        %340 = vdwg.mxu0
        %v342 = vlaneseq
        %v343 = vshrl.u32 %v342, 7
        %v344 = vsub.s32 0, %v343
        %v345 = vrot.slane %v258, %v344
        %v347 = vadd.f32 %v345, %v335
        %v348 = vadd.f32 %v345, %v338
        %s349 = scalar_lea.vmem [#allocation2], 28
        %v350 = vld [vmem:[%s349] sm:$0xf]
        %v351 = vld [vmem:[%s349 + $0x4] sm:$0xf]
        %v352 = vld [vmem:[%s349 + $0x8] sm:$0xf]
        %v353 = vld [vmem:[%s349 + $0xc] sm:$0xf]
        %v354 = vld [vmem:[%s349 + $0x10] sm:$0xf]
        %v355 = vld [vmem:[%s349 + $0x14] sm:$0xf]
        %v356 = vld [vmem:[%s349 + $0x18] sm:$0x7]
        %v358 = vunpack.c.l.b16 %v257
        %v359 = vpack.c.b16 %v358, %v358
        %vm360 = vsmask.f32 7424
        %v361 = vshrl.u32 %v270, 16
        %v363 = vshll.u32 %v270, 16
        %v365 = vrot.slane %v363, 1
        %v366 = vor.u32 %v361, %v365
        %v368 = vshll.u32 %v359, 16
        %v370 = vrot.slane %v368, 1
        %v371 = vsel %vm360, %v366, %v370
        %v379 = vunpack.c.l.b16 %v350
        %v380 = vunpack.c.l.b16 %v351
        %v381 = vunpack.c.l.b16 %v352
        %v382 = vunpack.c.l.b16 %v353
        %v383 = vunpack.c.l.b16 %v354
        %v384 = vunpack.c.l.b16 %v355
        %v385 = vunpack.c.l.b16 %v356
        %v386 = vpack.c.b16 %v380, %v379
        %v387 = vpack.c.b16 %v382, %v381
        %v388 = vpack.c.b16 %v384, %v383
        %v389 = vpack.c.b16 %v385, %v385
        %v394 = vsel %vm292, %v371, 0
        %v397 = vsel %vm296, %v389, 0
        %399 = vmatprep.subr.bf16.mxu0 0
        %400 = vmatpush1.bf16.msra.mxu0 %v386
        %401 = vmatprep.subr.bf16.mxu0 0
        %402 = vmatpush1.bf16.msra.mxu0 %v387
        %403 = vmatprep.subr.bf16.mxu0 0
        %404 = vmatpush1.bf16.msra.mxu0 %v388
        %405 = vmatprep.subr.bf16.mxu0 0
        %406 = vmatpush1.bf16.msra.mxu0 %v397
        %407 = vmatprep.subr.bf16.mxu0 0
        %408 = vmatpush1.bf16.msra.mxu0 0
        %409 = vmatprep.subr.bf16.mxu0 0
        %410 = vmatpush1.bf16.msra.mxu0 0
        %411 = vmatprep.subr.bf16.mxu0 0
        %412 = vmatpush1.bf16.msra.mxu0 0
        %413 = vmatprep.subr.bf16.mxu0 0
        %414 = vmatpush1.bf16.msra.mxu0 0
        %415 = vmatprep.subr.bf16.mxu0 0
        %416 = vmatpush1.bf16.msra.mxu0 0
        %417 = vmatprep.subr.bf16.mxu0 0
        %418 = vmatpush1.bf16.msra.mxu0 0
        %419 = vmatprep.subr.bf16.mxu0 0
        %420 = vmatpush1.bf16.msra.mxu0 0
        %421 = vmatprep.subr.bf16.mxu0 0
        %422 = vmatpush1.bf16.msra.mxu0 0
        %423 = vmatprep.subr.bf16.mxu0 0
        %424 = vmatpush1.bf16.msra.mxu0 0
        %425 = vmatprep.subr.bf16.mxu0 0
        %426 = vmatpush1.bf16.msra.mxu0 0
        %427 = vmatprep.subr.bf16.mxu0 0
        %428 = vmatpush1.bf16.msra.mxu0 0
        %429 = vmatprep.subr.bf16.mxu0 0
        %430 = vmatpush1.bf16.msra.mxu0 0
        %431 = vmatprep.mubr.bf16.mxu0 0
        %432 = vmatmul.mubr.bf16.gmra.mrb[0].mxu0 %v394
        %v433 = vpop.f32.mrb[0].mxu0
        %v434 = vadd.f32 0.0, %v433
        %v435 = vpop.f32.mrb[0].mxu0
        %v436 = vpop.f32.mrb[0].mxu0
        %v437 = vadd.f32 0.0, %v436
        %v438 = vpop.f32.mrb[0].mxu0
        %439 = vdwg.mxu0
        %v440 = vadd.f32 %v347, %v434
        %v441 = vadd.f32 %v348, %v437
        %s442 = scalar_lea.vmem [#allocation2], 56
        %v443 = vld [vmem:[%s442] sm:$0xf]
        %v444 = vld [vmem:[%s442 + $0x4] sm:$0xf]
        %v445 = vld [vmem:[%s442 + $0x8] sm:$0xf]
        %v446 = vld [vmem:[%s442 + $0xc] sm:$0xf]
        %v447 = vld [vmem:[%s442 + $0x10] sm:$0xf]
        %v448 = vld [vmem:[%s442 + $0x14] sm:$0xf]
        %v449 = vld [vmem:[%s442 + $0x18] sm:$0x7]
        %vm450 = vcmask 1046528
        %v451 = vrot.slane %v270, 1
        %v452 = vrot.slane %v359, 1
        %v453 = vsel %vm450, %v451, %v452
        %v461 = vunpack.c.l.b16 %v443
        %v462 = vunpack.c.l.b16 %v444
        %v463 = vunpack.c.l.b16 %v445
        %v464 = vunpack.c.l.b16 %v446
        %v465 = vunpack.c.l.b16 %v447
        %v466 = vunpack.c.l.b16 %v448
        %v467 = vunpack.c.l.b16 %v449
        %v468 = vpack.c.b16 %v462, %v461
        %v469 = vpack.c.b16 %v464, %v463
        %v470 = vpack.c.b16 %v466, %v465
        %v471 = vpack.c.b16 %v467, %v467
        %v476 = vsel %vm292, %v453, 0
        %v479 = vsel %vm296, %v471, 0
        %481 = vmatprep.subr.bf16.mxu0 0
        %482 = vmatpush1.bf16.msra.mxu0 %v468
        %483 = vmatprep.subr.bf16.mxu0 0
        %484 = vmatpush1.bf16.msra.mxu0 %v469
        %485 = vmatprep.subr.bf16.mxu0 0
        %486 = vmatpush1.bf16.msra.mxu0 %v470
        %487 = vmatprep.subr.bf16.mxu0 0
        %488 = vmatpush1.bf16.msra.mxu0 %v479
        %489 = vmatprep.subr.bf16.mxu0 0
        %490 = vmatpush1.bf16.msra.mxu0 0
        %491 = vmatprep.subr.bf16.mxu0 0
        %492 = vmatpush1.bf16.msra.mxu0 0
        %493 = vmatprep.subr.bf16.mxu0 0
        %494 = vmatpush1.bf16.msra.mxu0 0
        %495 = vmatprep.subr.bf16.mxu0 0
        %496 = vmatpush1.bf16.msra.mxu0 0
        %497 = vmatprep.subr.bf16.mxu0 0
        %498 = vmatpush1.bf16.msra.mxu0 0
        %499 = vmatprep.subr.bf16.mxu0 0
        %500 = vmatpush1.bf16.msra.mxu0 0
        %501 = vmatprep.subr.bf16.mxu0 0
        %502 = vmatpush1.bf16.msra.mxu0 0
        %503 = vmatprep.subr.bf16.mxu0 0
        %504 = vmatpush1.bf16.msra.mxu0 0
        %505 = vmatprep.subr.bf16.mxu0 0
        %506 = vmatpush1.bf16.msra.mxu0 0
        %507 = vmatprep.subr.bf16.mxu0 0
        %508 = vmatpush1.bf16.msra.mxu0 0
        %509 = vmatprep.subr.bf16.mxu0 0
        %510 = vmatpush1.bf16.msra.mxu0 0
        %511 = vmatprep.subr.bf16.mxu0 0
        %512 = vmatpush1.bf16.msra.mxu0 0
        %513 = vmatprep.mubr.bf16.mxu0 0
        %514 = vmatmul.mubr.bf16.gmra.mrb[0].mxu0 %v476
        %v515 = vpop.f32.mrb[0].mxu0
        %v516 = vadd.f32 0.0, %v515
        %v517 = vpop.f32.mrb[0].mxu0
        %v518 = vpop.f32.mrb[0].mxu0
        %v519 = vadd.f32 0.0, %v518
        %v520 = vpop.f32.mrb[0].mxu0
        %521 = vdwg.mxu0
        %v522 = vadd.f32 %v440, %v516
        %v523 = vadd.f32 %v441, %v519
        %524 = vrot.lane.b32.xlu0 %v522, 120
        %v525 = vpop.permute.xlu0 %524
        %526 = vrot.lane.b32.xlu0 %v523, 120
        %v527 = vpop.permute.xlu0 %526
        %v528 = vmax.f32 %v522, %v525
        %v529 = vmax.f32 %v523, %v527
        %vm532 = vcmask 1046528
        %v533 = vrot.slane %v528, 1
        %v534 = vrot.slane %v529, 1
        %v535 = vsel %vm532, %v533, %v534
        %v538 = vmax.f32 %v528, %v535
        %v539 = vmax.f32 %v529, %v534
        %v540 = vlaneseq
        %v541 = vand.u32 %v540, 127
        %vm542 = vcmp.lt.s32.totalorder %v541, 120
        %v543 = vsel %vm542, %v538, 0.0
        %v544 = vsel %vm542, %v539, 0.0
        %vm547 = vcmask 1040384
        %v548 = vrot.slane %v543, 7
        %v549 = vrot.slane %v544, 7
        %v550 = vsel %vm547, %v548, %v549
        %v553 = vsel %vm547, 0.0, %v548
        %v554 = vpack.c.bf16 %v550, %v553
        %v555 = vpack.c.bf16 0.0, 0.0
        %v556 = vld [vmem:[%s4] sm:$0x3]
        %v557 = vld [vmem:[#allocation5] sm:$0xff]
        %v558 = vld [vmem:[#allocation5 + $0x8] sm:$0xff]
        %v559 = vld [vmem:[#allocation5 + $0x10] sm:$0xff]
        %v560 = vld [vmem:[#allocation5 + $0x18] sm:$0xff]
        %v561 = vld [vmem:[#allocation5 + $0x20] sm:$0xff]
        %v562 = vld [vmem:[#allocation5 + $0x28] sm:$0xff]
        %v563 = vld [vmem:[#allocation5 + $0x30] sm:$0xff]
        %v564 = vld [vmem:[#allocation5 + $0x38] sm:$0xff]
        %v565 = vld [vmem:[#allocation5 + $0x40] sm:$0xff]
        %v566 = vld [vmem:[#allocation5 + $0x48] sm:$0xff]
        %v567 = vld [vmem:[#allocation5 + $0x50] sm:$0xff]
        %v568 = vld [vmem:[#allocation5 + $0x58] sm:$0xff]
        %v569 = vld [vmem:[#allocation5 + $0x60] sm:$0xff]
        %v570 = vld [vmem:[#allocation5 + $0x68] sm:$0xff]
        %v571 = vld [vmem:[#allocation5 + $0x70] sm:$0xff]
        %v572 = vld [vmem:[#allocation5 + $0x78] sm:$0xff]
        %v589 = vunpack.c.l.b16 %v557
        %v590 = vunpack.c.h.b16 %v557
        %v591 = vunpack.c.l.b16 %v558
        %v592 = vunpack.c.h.b16 %v558
        %v593 = vunpack.c.l.b16 %v559
        %v594 = vunpack.c.h.b16 %v559
        %v595 = vunpack.c.l.b16 %v560
        %v596 = vunpack.c.h.b16 %v560
        %v597 = vunpack.c.l.b16 %v561
        %v598 = vunpack.c.h.b16 %v561
        %v599 = vunpack.c.l.b16 %v562
        %v600 = vunpack.c.h.b16 %v562
        %v601 = vunpack.c.l.b16 %v563
        %v602 = vunpack.c.h.b16 %v563
        %v603 = vunpack.c.l.b16 %v564
        %v604 = vunpack.c.h.b16 %v564
        %v605 = vunpack.c.l.b16 %v565
        %v606 = vunpack.c.h.b16 %v565
        %v607 = vunpack.c.l.b16 %v566
        %v608 = vunpack.c.h.b16 %v566
        %v609 = vunpack.c.l.b16 %v567
        %v610 = vunpack.c.h.b16 %v567
        %v611 = vunpack.c.l.b16 %v568
        %v612 = vunpack.c.h.b16 %v568
        %v613 = vunpack.c.l.b16 %v569
        %v614 = vunpack.c.h.b16 %v569
        %v615 = vunpack.c.l.b16 %v570
        %v616 = vunpack.c.h.b16 %v570
        %v617 = vunpack.c.l.b16 %v571
        %v618 = vunpack.c.h.b16 %v571
        %v619 = vunpack.c.l.b16 %v572
        %v620 = vunpack.c.h.b16 %v572
        %v621 = vpack.c.b16 %v591, %v589
        %v622 = vpack.c.b16 %v592, %v590
        %v623 = vpack.c.b16 %v595, %v593
        %v624 = vpack.c.b16 %v596, %v594
        %v625 = vpack.c.b16 %v599, %v597
        %v626 = vpack.c.b16 %v600, %v598
        %v627 = vpack.c.b16 %v603, %v601
        %v628 = vpack.c.b16 %v604, %v602
        %v629 = vpack.c.b16 %v607, %v605
        %v630 = vpack.c.b16 %v608, %v606
        %v631 = vpack.c.b16 %v611, %v609
        %v632 = vpack.c.b16 %v612, %v610
        %v633 = vpack.c.b16 %v615, %v613
        %v634 = vpack.c.b16 %v616, %v614
        %v635 = vpack.c.b16 %v619, %v617
        %v636 = vpack.c.b16 %v620, %v618
        %653 = vmatprep.subr.bf16.mxu0 %v622
        %654 = vmatpush1.bf16.msra.mxu0 %v621
        %655 = vmatprep.subr.bf16.mxu0 %v624
        %656 = vmatpush1.bf16.msra.mxu0 %v623
        %657 = vmatprep.subr.bf16.mxu0 %v626
        %658 = vmatpush1.bf16.msra.mxu0 %v625
        %659 = vmatprep.subr.bf16.mxu0 %v628
        %660 = vmatpush1.bf16.msra.mxu0 %v627
        %661 = vmatprep.subr.bf16.mxu0 %v630
        %662 = vmatpush1.bf16.msra.mxu0 %v629
        %663 = vmatprep.subr.bf16.mxu0 %v632
        %664 = vmatpush1.bf16.msra.mxu0 %v631
        %665 = vmatprep.subr.bf16.mxu0 %v634
        %666 = vmatpush1.bf16.msra.mxu0 %v633
        %667 = vmatprep.subr.bf16.mxu0 %v636
        %668 = vmatpush1.bf16.msra.mxu0 %v635
        %669 = vmatprep.subr.bf16.mxu0 0
        %670 = vmatpush1.bf16.msra.mxu0 0
        %671 = vmatprep.subr.bf16.mxu0 0
        %672 = vmatpush1.bf16.msra.mxu0 0
        %673 = vmatprep.subr.bf16.mxu0 0
        %674 = vmatpush1.bf16.msra.mxu0 0
        %675 = vmatprep.subr.bf16.mxu0 0
        %676 = vmatpush1.bf16.msra.mxu0 0
        %677 = vmatprep.subr.bf16.mxu0 0
        %678 = vmatpush1.bf16.msra.mxu0 0
        %679 = vmatprep.subr.bf16.mxu0 0
        %680 = vmatpush1.bf16.msra.mxu0 0
        %681 = vmatprep.subr.bf16.mxu0 0
        %682 = vmatpush1.bf16.msra.mxu0 0
        %683 = vmatprep.subr.bf16.mxu0 0
        %684 = vmatpush1.bf16.msra.mxu0 0
        %685 = vmatprep.mubr.bf16.mxu0 0
        %686 = vmatmul.mubr.bf16.gmra.mrb[0].mxu0 %v554
        %v687 = vpop.f32.mrb[0].mxu0
        %v688 = vadd.f32 0.0, %v687
        %v689 = vpop.f32.mrb[0].mxu0
        %v690 = vadd.f32 0.0, %v689
        %v691 = vpop.f32.mrb[0].mxu0
        %v692 = vadd.f32 0.0, %v691
        %v693 = vpop.f32.mrb[0].mxu0
        %v694 = vadd.f32 0.0, %v693
        %695 = vdwg.mxu0
        %v697 = vlaneseq
        %v698 = vshrl.u32 %v697, 7
        %v699 = vsub.s32 0, %v698
        %v700 = vrot.slane %v556, %v699
        %v701 = vlaneseq
        %v702 = vshrl.u32 %v701, 7
        %v703 = vsub.s32 1, %v702
        %v704 = vrot.slane %v556, %v703
        %v707 = vadd.f32 %v700, %v688
        %v708 = vadd.f32 %v704, %v690
        %v709 = vadd.f32 %v700, %v692
        %v710 = vadd.f32 %v704, %v694
        %s711 = scalar_lea.vmem [#allocation5], 128
        %v712 = vld [vmem:[%s711] sm:$0xff]
        %v713 = vld [vmem:[%s711 + $0x8] sm:$0xff]
        %v714 = vld [vmem:[%s711 + $0x10] sm:$0xff]
        %v715 = vld [vmem:[%s711 + $0x18] sm:$0xff]
        %v716 = vld [vmem:[%s711 + $0x20] sm:$0xff]
        %v717 = vld [vmem:[%s711 + $0x28] sm:$0xff]
        %v718 = vld [vmem:[%s711 + $0x30] sm:$0xff]
        %v719 = vld [vmem:[%s711 + $0x38] sm:$0xff]
        %v720 = vld [vmem:[%s711 + $0x40] sm:$0xff]
        %v721 = vld [vmem:[%s711 + $0x48] sm:$0xff]
        %v722 = vld [vmem:[%s711 + $0x50] sm:$0xff]
        %v723 = vld [vmem:[%s711 + $0x58] sm:$0xff]
        %v724 = vld [vmem:[%s711 + $0x60] sm:$0xff]
        %v725 = vld [vmem:[%s711 + $0x68] sm:$0xff]
        %v726 = vld [vmem:[%s711 + $0x70] sm:$0xff]
        %v727 = vld [vmem:[%s711 + $0x78] sm:$0xff]
        %v729 = vshrl.u32 %v554, 16
        %v731 = vshll.u32 %v554, 16
        %v733 = vrot.slane %v731, 1
        %v734 = vor.u32 %v729, %v733
        %v736 = vshll.u32 %v555, 16
        %v738 = vrot.slane %v736, 1
        %v739 = vsel %vm360, %v734, %v738
        %v757 = vunpack.c.l.b16 %v712
        %v758 = vunpack.c.h.b16 %v712
        %v759 = vunpack.c.l.b16 %v713
        %v760 = vunpack.c.h.b16 %v713
        %v761 = vunpack.c.l.b16 %v714
        %v762 = vunpack.c.h.b16 %v714
        %v763 = vunpack.c.l.b16 %v715
        %v764 = vunpack.c.h.b16 %v715
        %v765 = vunpack.c.l.b16 %v716
        %v766 = vunpack.c.h.b16 %v716
        %v767 = vunpack.c.l.b16 %v717
        %v768 = vunpack.c.h.b16 %v717
        %v769 = vunpack.c.l.b16 %v718
        %v770 = vunpack.c.h.b16 %v718
        %v771 = vunpack.c.l.b16 %v719
        %v772 = vunpack.c.h.b16 %v719
        %v773 = vunpack.c.l.b16 %v720
        %v774 = vunpack.c.h.b16 %v720
        %v775 = vunpack.c.l.b16 %v721
        %v776 = vunpack.c.h.b16 %v721
        %v777 = vunpack.c.l.b16 %v722
        %v778 = vunpack.c.h.b16 %v722
        %v779 = vunpack.c.l.b16 %v723
        %v780 = vunpack.c.h.b16 %v723
        %v781 = vunpack.c.l.b16 %v724
        %v782 = vunpack.c.h.b16 %v724
        %v783 = vunpack.c.l.b16 %v725
        %v784 = vunpack.c.h.b16 %v725
        %v785 = vunpack.c.l.b16 %v726
        %v786 = vunpack.c.h.b16 %v726
        %v787 = vunpack.c.l.b16 %v727
        %v788 = vunpack.c.h.b16 %v727
        %v789 = vpack.c.b16 %v759, %v757
        %v790 = vpack.c.b16 %v760, %v758
        %v791 = vpack.c.b16 %v763, %v761
        %v792 = vpack.c.b16 %v764, %v762
        %v793 = vpack.c.b16 %v767, %v765
        %v794 = vpack.c.b16 %v768, %v766
        %v795 = vpack.c.b16 %v771, %v769
        %v796 = vpack.c.b16 %v772, %v770
        %v797 = vpack.c.b16 %v775, %v773
        %v798 = vpack.c.b16 %v776, %v774
        %v799 = vpack.c.b16 %v779, %v777
        %v800 = vpack.c.b16 %v780, %v778
        %v801 = vpack.c.b16 %v783, %v781
        %v802 = vpack.c.b16 %v784, %v782
        %v803 = vpack.c.b16 %v787, %v785
        %v804 = vpack.c.b16 %v788, %v786
        %821 = vmatprep.subr.bf16.mxu0 %v790
        %822 = vmatpush1.bf16.msra.mxu0 %v789
        %823 = vmatprep.subr.bf16.mxu0 %v792
        %824 = vmatpush1.bf16.msra.mxu0 %v791
        %825 = vmatprep.subr.bf16.mxu0 %v794
        %826 = vmatpush1.bf16.msra.mxu0 %v793
        %827 = vmatprep.subr.bf16.mxu0 %v796
        %828 = vmatpush1.bf16.msra.mxu0 %v795
        %829 = vmatprep.subr.bf16.mxu0 %v798
        %830 = vmatpush1.bf16.msra.mxu0 %v797
        %831 = vmatprep.subr.bf16.mxu0 %v800
        %832 = vmatpush1.bf16.msra.mxu0 %v799
        %833 = vmatprep.subr.bf16.mxu0 %v802
        %834 = vmatpush1.bf16.msra.mxu0 %v801
        %835 = vmatprep.subr.bf16.mxu0 %v804
        %836 = vmatpush1.bf16.msra.mxu0 %v803
        %837 = vmatprep.subr.bf16.mxu0 0
        %838 = vmatpush1.bf16.msra.mxu0 0
        %839 = vmatprep.subr.bf16.mxu0 0
        %840 = vmatpush1.bf16.msra.mxu0 0
        %841 = vmatprep.subr.bf16.mxu0 0
        %842 = vmatpush1.bf16.msra.mxu0 0
        %843 = vmatprep.subr.bf16.mxu0 0
        %844 = vmatpush1.bf16.msra.mxu0 0
        %845 = vmatprep.subr.bf16.mxu0 0
        %846 = vmatpush1.bf16.msra.mxu0 0
        %847 = vmatprep.subr.bf16.mxu0 0
        %848 = vmatpush1.bf16.msra.mxu0 0
        %849 = vmatprep.subr.bf16.mxu0 0
        %850 = vmatpush1.bf16.msra.mxu0 0
        %851 = vmatprep.subr.bf16.mxu0 0
        %852 = vmatpush1.bf16.msra.mxu0 0
        %853 = vmatprep.mubr.bf16.mxu0 0
        %854 = vmatmul.mubr.bf16.gmra.mrb[0].mxu0 %v739
        %v855 = vpop.f32.mrb[0].mxu0
        %v856 = vadd.f32 0.0, %v855
        %v857 = vpop.f32.mrb[0].mxu0
        %v858 = vadd.f32 0.0, %v857
        %v859 = vpop.f32.mrb[0].mxu0
        %v860 = vadd.f32 0.0, %v859
        %v861 = vpop.f32.mrb[0].mxu0
        %v862 = vadd.f32 0.0, %v861
        %863 = vdwg.mxu0
        %v864 = vadd.f32 %v707, %v856
        %v865 = vadd.f32 %v708, %v858
        %v866 = vadd.f32 %v709, %v860
        %v867 = vadd.f32 %v710, %v862
        %s868 = scalar_lea.vmem [#allocation5], 256
        %v869 = vld [vmem:[%s868] sm:$0xff]
        %v870 = vld [vmem:[%s868 + $0x8] sm:$0xff]
        %v871 = vld [vmem:[%s868 + $0x10] sm:$0xff]
        %v872 = vld [vmem:[%s868 + $0x18] sm:$0xff]
        %v873 = vld [vmem:[%s868 + $0x20] sm:$0xff]
        %v874 = vld [vmem:[%s868 + $0x28] sm:$0xff]
        %v875 = vld [vmem:[%s868 + $0x30] sm:$0xff]
        %v876 = vld [vmem:[%s868 + $0x38] sm:$0xff]
        %v877 = vld [vmem:[%s868 + $0x40] sm:$0xff]
        %v878 = vld [vmem:[%s868 + $0x48] sm:$0xff]
        %v879 = vld [vmem:[%s868 + $0x50] sm:$0xff]
        %v880 = vld [vmem:[%s868 + $0x58] sm:$0xff]
        %v881 = vld [vmem:[%s868 + $0x60] sm:$0xff]
        %v882 = vld [vmem:[%s868 + $0x68] sm:$0xff]
        %v883 = vld [vmem:[%s868 + $0x70] sm:$0xff]
        %v884 = vld [vmem:[%s868 + $0x78] sm:$0xff]
        %v887 = vrot.slane %v554, 1
        %v888 = vrot.slane %v555, 1
        %v889 = vsel %vm450, %v887, %v888
        %v907 = vunpack.c.l.b16 %v869
        %v908 = vunpack.c.h.b16 %v869
        %v909 = vunpack.c.l.b16 %v870
        %v910 = vunpack.c.h.b16 %v870
        %v911 = vunpack.c.l.b16 %v871
        %v912 = vunpack.c.h.b16 %v871
        %v913 = vunpack.c.l.b16 %v872
        %v914 = vunpack.c.h.b16 %v872
        %v915 = vunpack.c.l.b16 %v873
        %v916 = vunpack.c.h.b16 %v873
        %v917 = vunpack.c.l.b16 %v874
        %v918 = vunpack.c.h.b16 %v874
        %v919 = vunpack.c.l.b16 %v875
        %v920 = vunpack.c.h.b16 %v875
        %v921 = vunpack.c.l.b16 %v876
        %v922 = vunpack.c.h.b16 %v876
        %v923 = vunpack.c.l.b16 %v877
        %v924 = vunpack.c.h.b16 %v877
        %v925 = vunpack.c.l.b16 %v878
        %v926 = vunpack.c.h.b16 %v878
        %v927 = vunpack.c.l.b16 %v879
        %v928 = vunpack.c.h.b16 %v879
        %v929 = vunpack.c.l.b16 %v880
        %v930 = vunpack.c.h.b16 %v880
        %v931 = vunpack.c.l.b16 %v881
        %v932 = vunpack.c.h.b16 %v881
        %v933 = vunpack.c.l.b16 %v882
        %v934 = vunpack.c.h.b16 %v882
        %v935 = vunpack.c.l.b16 %v883
        %v936 = vunpack.c.h.b16 %v883
        %v937 = vunpack.c.l.b16 %v884
        %v938 = vunpack.c.h.b16 %v884
        %v939 = vpack.c.b16 %v909, %v907
        %v940 = vpack.c.b16 %v910, %v908
        %v941 = vpack.c.b16 %v913, %v911
        %v942 = vpack.c.b16 %v914, %v912
        %v943 = vpack.c.b16 %v917, %v915
        %v944 = vpack.c.b16 %v918, %v916
        %v945 = vpack.c.b16 %v921, %v919
        %v946 = vpack.c.b16 %v922, %v920
        %v947 = vpack.c.b16 %v925, %v923
        %v948 = vpack.c.b16 %v926, %v924
        %v949 = vpack.c.b16 %v929, %v927
        %v950 = vpack.c.b16 %v930, %v928
        %v951 = vpack.c.b16 %v933, %v931
        %v952 = vpack.c.b16 %v934, %v932
        %v953 = vpack.c.b16 %v937, %v935
        %v954 = vpack.c.b16 %v938, %v936
        %971 = vmatprep.subr.bf16.mxu0 %v940
        %972 = vmatpush1.bf16.msra.mxu0 %v939
        %973 = vmatprep.subr.bf16.mxu0 %v942
        %974 = vmatpush1.bf16.msra.mxu0 %v941
        %975 = vmatprep.subr.bf16.mxu0 %v944
        %976 = vmatpush1.bf16.msra.mxu0 %v943
        %977 = vmatprep.subr.bf16.mxu0 %v946
        %978 = vmatpush1.bf16.msra.mxu0 %v945
        %979 = vmatprep.subr.bf16.mxu0 %v948
        %980 = vmatpush1.bf16.msra.mxu0 %v947
        %981 = vmatprep.subr.bf16.mxu0 %v950
        %982 = vmatpush1.bf16.msra.mxu0 %v949
        %983 = vmatprep.subr.bf16.mxu0 %v952
        %984 = vmatpush1.bf16.msra.mxu0 %v951
        %985 = vmatprep.subr.bf16.mxu0 %v954
        %986 = vmatpush1.bf16.msra.mxu0 %v953
        %987 = vmatprep.subr.bf16.mxu0 0
        %988 = vmatpush1.bf16.msra.mxu0 0
        %989 = vmatprep.subr.bf16.mxu0 0
        %990 = vmatpush1.bf16.msra.mxu0 0
        %991 = vmatprep.subr.bf16.mxu0 0
        %992 = vmatpush1.bf16.msra.mxu0 0
        %993 = vmatprep.subr.bf16.mxu0 0
        %994 = vmatpush1.bf16.msra.mxu0 0
        %995 = vmatprep.subr.bf16.mxu0 0
        %996 = vmatpush1.bf16.msra.mxu0 0
        %997 = vmatprep.subr.bf16.mxu0 0
        %998 = vmatpush1.bf16.msra.mxu0 0
        %999 = vmatprep.subr.bf16.mxu0 0
        %1000 = vmatpush1.bf16.msra.mxu0 0
        %1001 = vmatprep.subr.bf16.mxu0 0
        %1002 = vmatpush1.bf16.msra.mxu0 0
        %1003 = vmatprep.mubr.bf16.mxu0 0
        %1004 = vmatmul.mubr.bf16.gmra.mrb[0].mxu0 %v889
        %v1005 = vpop.f32.mrb[0].mxu0
        %v1006 = vadd.f32 0.0, %v1005
        %v1007 = vpop.f32.mrb[0].mxu0
        %v1008 = vadd.f32 0.0, %v1007
        %v1009 = vpop.f32.mrb[0].mxu0
        %v1010 = vadd.f32 0.0, %v1009
        %v1011 = vpop.f32.mrb[0].mxu0
        %v1012 = vadd.f32 0.0, %v1011
        %1013 = vdwg.mxu0
        %v1014 = vadd.f32 %v864, %v1006
        %v1015 = vadd.f32 %v865, %v1008
        %v1016 = vadd.f32 %v866, %v1010
        %v1017 = vadd.f32 %v867, %v1012
        %1018 = vst [vmem:[%s247] sm:$0xff] %v1014
        %1019 = vst [vmem:[%s247 + $0x8] sm:$0xff] %v1015
        %1020 = vst [vmem:[%s247 + $0x10] sm:$0xff] %v1016
        %1021 = vst [vmem:[%s247 + $0x18] sm:$0xff] %v1017
        %s1022 = sand.u32 %s139, 1
        %s1023 = scalar_lea.sflag [#allocation4], %s1022
        %s1024 = sand.u32 %s139, 1
        %s1025 = smul.addr %s1024, 32
        %s1026 = scalar_lea.vmem [#allocation7], %s1025
        // Predicated region
        $region49: #{tpu_custom_call.1} parent=39 // pred_check
          %p1027 = pneg %p149
        $region50: #{tpu_custom_call.1} parent=39 // pred_check_branch
          %1029 = sbr.rel (%p1027) target = $region52
        $region51: #{tpu_custom_call.1} parent=39 // pred_region
          %s1030 = smul.u32 2, %s21
          %s1032 = ssub.s32 512, 512
          %1033 = vsyncadd %s1023, %s1032
          %s1034 = smul.addr %s1030, 2
          %s1035 = smul.addr %s1034, 128
          %s1036 = scalar_lea.hbm %s5, %s1035
          %s1037 = sshll.u32 %s1026, 4
          %s1038 = int_to_ptr.vmem [resolvable:$true] %s1037
          %1043 = dma.vmem_to_hbm [thread:$0]  %s1038, 512, %s1036, %s1023, 256, 256, 16
        $region52: #{tpu_custom_call.1} parent=39 // pred_fallthru
          _
      $region40: #{tpu_custom_call.1} parent=5 // pred_fallthru
        _
      %p1044 = scmp.le.s32.totalorder 2, %s16
      // Predicated region
      $region53: #{tpu_custom_call.1} parent=5 // pred_check
        %p1045 = pneg %p1044
      $region54: #{tpu_custom_call.1} parent=5 // pred_check_branch
        %1047 = sbr.rel (%p1045) target = $region56
      $region55: #{tpu_custom_call.1} parent=5 // pred_region
        %s1048 = ssub.s32 %s16, 2
        // Predicated region
        $region57: #{tpu_custom_call.1} parent=55 // pred_check
          %p1049 = pneg %p155
        $region58: #{tpu_custom_call.1} parent=55 // pred_check_branch
          %1051 = sbr.rel (%p1049) target = $region60
        $region59: #{tpu_custom_call.1} parent=55 // pred_region
          %s1052 = sand.u32 %s140, 1
          %s1053 = scalar_lea.sflag [#allocation4], %s1052
          %s1054 = sand.u32 %s140, 1
          %s1055 = smul.addr %s1054, 32
          %s1056 = scalar_lea.vmem [#allocation7], %s1055
          %1057 = dma.done %s1053, 512
        $region60: #{tpu_custom_call.1} parent=55 // pred_fallthru
          _
      $region56: #{tpu_custom_call.1} parent=5 // pred_fallthru
        _
    $region6: #{tpu_custom_call.1} parent=1 // loop_footer
      %s20 = sadd.s32 1, %s16
    $region7: #{tpu_custom_call.1} parent=1 // loop_footer_branch
      %15 = sbr.rel target = $region3
    $region8: #{tpu_custom_call.1} parent=1 // loop_exit
      _
    %1058 = vsyncpa [#allocation3], 1
    %s1059 = scalar_lea.sflag [#allocation3], 1
    %1060 = vsyncpa %s1059, 1
    %1061 = vsyncpa [#allocation6], 1
    %1062 = vsyncpa [#allocation4], 1
    %s1063 = scalar_lea.sflag [#allocation4], 1
    %1064 = vsyncpa %s1063, 1

</llo_original>
